<compile_context>
chip_gen: v7x
topology: tpu7x:2x2x1
jax: 0.10.0
libtpu: 0.0.40
codegen_flags: <defaults>
</compile_context>

<pallas_src>
import functools

import jax
import jax.numpy as jnp
from jax.experimental import pallas as pl
from jax.experimental.pallas import tpu as pltpu

_SUBLANE = 8                          # vreg sublane count (second-to-last dim)
_VMEM_SOFT_DEFAULT = 30 * 1024 * 1024  # stay under the 32 MiB scoped default


def _round_up(x: int, m: int) -> int:
    return ((x + m - 1) // m) * m


def _fused_mlp_kernel(*refs, num_layers: int, sigmoid_output: bool, compute_dtype):
    """One row-tile of the whole MLP. refs = (x, w0, b0, ..., wL-1, bL-1, out)."""
    x_ref = refs[0]
    o_ref = refs[-1]
    params = refs[1:-1]

    h = x_ref[...]
    for i in range(num_layers):                      # statically unrolled
        w = params[2 * i][...]                       # pre-cast to compute dtype
        b = params[2 * i + 1][...]                   # (1, Dout) f32 -> broadcasts
        a = h.astype(compute_dtype) if compute_dtype is not None else h
        y = jnp.dot(a, w, preferred_element_type=jnp.float32)   # MXU, f32 acc
        y = y + b                                                 # f32 epilogue
        if i < num_layers - 1:
            y = jnp.maximum(y, 0.0)                              # ReLU (VPU)
        elif sigmoid_output:
            # sigmoid = 1 / (1 + exp(-y)); exp -> EUP, approx reciprocal -> EUP vrcp.
            y = pl.reciprocal(1.0 + jnp.exp(-y), approx=True)
        h = y
    o_ref[...] = h.astype(o_ref.dtype)


def mlp_forward_pallas(x, weights, biases, *, sigmoid_output: bool,
                       compute_dtype=None):
    """x: (..., input_dim). weights[l]: (Din_l, Dout_l) (already in the matmul
    operand dtype), biases[l]: (1, Dout_l) f32. Returns (..., output_dim)."""
    num_layers = len(weights)
    lead_shape = x.shape[:-1]
    d_in = x.shape[-1]
    d_out = weights[-1].shape[1]
    x2 = x.reshape(-1, d_in)
    n = x2.shape[0]

    # Row tiling only; all feature dims stay unpadded (block last dim == full dim).
    if n <= 256:
        tile_rows = _round_up(max(n, 1), _SUBLANE)      # single lane-aligned block
    else:
        # Big tiles amortize the ~0.35 us/grid-step overhead, but keep >= 2 tiles
        # so the "parallel" axis can shard across the 2 TensorCores on v7x.
        tile_rows = min(512, _round_up(pl.cdiv(n, 2), _SUBLANE))
    n_pad = _round_up(n, tile_rows)
    if n_pad != n:
        x2 = jnp.pad(x2, ((0, n_pad - n), (0, 0)))      # rows only

    kernel = functools.partial(
        _fused_mlp_kernel,
        num_layers=num_layers,
        sigmoid_output=sigmoid_output,
        compute_dtype=compute_dtype,
    )

    in_specs = [pl.BlockSpec((tile_rows, d_in), lambda i: (i, 0))]
    args = [x2]
    for w, b in zip(weights, biases):
        # Constant index_map -> weights/biases stay VMEM-resident across row tiles.
        in_specs.append(pl.BlockSpec(w.shape, lambda i: (0, 0)))
        in_specs.append(pl.BlockSpec(b.shape, lambda i: (0, 0)))
        args.append(w)
        args.append(b)

    # Explicit VMEM limit only when the (double-buffered) footprint would blow
    # the scoped default (matters on v7x with large hidden dims).
    est = 2 * tile_rows * d_in * x2.dtype.itemsize
    est += 2 * tile_rows * d_out * x.dtype.itemsize
    for w, b in zip(weights, biases):
        est += 2 * (w.size * w.dtype.itemsize + b.size * b.dtype.itemsize)
    cp_kwargs = dict(dimension_semantics=("parallel",))
    if est > _VMEM_SOFT_DEFAULT:
        cp_kwargs["vmem_limit_bytes"] = int(min(2 * est, 64 * 1024 * 1024))

    out = pl.pallas_call(
        kernel,
        out_shape=jax.ShapeDtypeStruct((n_pad, d_out), x.dtype),
        grid=(n_pad // tile_rows,),
        in_specs=in_specs,
        out_specs=pl.BlockSpec((tile_rows, d_out), lambda i: (i, 0)),
        compiler_params=pltpu.CompilerParams(**cp_kwargs),
    )(*args)

    if n_pad != n:
        out = out[:n]
    return out.reshape(*lead_shape, d_out)


class MLPPallas:
    """Mirror of SAM's MLP module; the whole forward is one fused Pallas kernel."""

    def __init__(self, input_dim, hidden_dim, output_dim, num_layers,
                 sigmoid_output=False, key=None, dtype=jnp.float32,
                 compute_dtype=None):
        self.num_layers = num_layers
        self.output_dim = output_dim
        self.sigmoid_output = sigmoid_output
        self.compute_dtype = compute_dtype   # e.g. jnp.bfloat16 on v6e/v7x

        h = [hidden_dim] * (num_layers - 1)
        dims_in = [input_dim] + h
        dims_out = h + [output_dim]
        if key is None:
            key = jax.random.PRNGKey(0)

        self.weights = []      # raw f32 (in, out), pure-JAX reference
        self.biases = []       # raw f32 (out,)
        self.weights_k = []    # kernel operands, pre-cast to compute_dtype
        self.biases_k = []     # (1, out) f32 for the f32 epilogue
        for n_in, n_out in zip(dims_in, dims_out):
            key, kw, kb = jax.random.split(key, 3)
            # PyTorch Linear default init: U(-1/sqrt(fan_in), 1/sqrt(fan_in)).
            bound = 1.0 / (n_in ** 0.5)
            w = jax.random.uniform(kw, (n_in, n_out), dtype, -bound, bound)
            b = jax.random.uniform(kb, (n_out,), dtype, -bound, bound)
            self.weights.append(w)
            self.biases.append(b)
            wk = w.astype(compute_dtype) if compute_dtype is not None else w
            self.weights_k.append(wk)
            self.biases_k.append(b.reshape(1, n_out))

    def __call__(self, x):
        return mlp_forward_pallas(
            x, self.weights_k, self.biases_k,
            sigmoid_output=self.sigmoid_output,
            compute_dtype=self.compute_dtype,
        )


def _reference_forward(mlp: MLPPallas, x):
    """Pure-JAX f32 reference matching the PyTorch semantics."""
    for i, (w, b) in enumerate(zip(mlp.weights, mlp.biases)):
        y = x @ w + b
        if i < mlp.num_layers - 1:
            y = jnp.maximum(y, 0.0)
        x = y
    if mlp.sigmoid_output:
        x = 1.0 / (1.0 + jnp.exp(-x))
    return x


if __name__ == "__main__":
    key = jax.random.PRNGKey(0)
    k_x, k_x2, k_p = jax.random.split(key, 3)

    # Shapes consistent with the MaskDecoder hypernetwork MLPs (rows batched).
    N, input_dim, hidden_dim, output_dim, num_layers = 64, 32, 32, 16, 3
    x = jax.random.normal(k_x, (N, input_dim), jnp.float32)

    # 1) f32, no sigmoid: single-tile path, exact vs reference.
    mlp_lin = MLPPallas(input_dim, hidden_dim, output_dim, num_layers,
                        sigmoid_output=False, key=k_p)
    out_lin = mlp_lin(x)
    jax.block_until_ready(out_lin)
    ref_lin = _reference_forward(mlp_lin, x)
    assert out_lin.shape == (N, output_dim)
    assert jnp.allclose(out_lin, ref_lin, atol=1e-5, rtol=1e-5)

    # 2) same params, large batch: exercises the multi-tile "parallel" grid
    #    path (>=2 tiles, row padding + slice).
    N2 = 600
    x_large = jax.random.normal(k_x2, (N2, input_dim), jnp.float32)
    out_large = mlp_lin(x_large)
    jax.block_until_ready(out_large)
    ref_large = _reference_forward(mlp_lin, x_large)
    assert out_large.shape == (N2, output_dim)
    assert jnp.allclose(out_large, ref_large, atol=1e-5, rtol=1e-5)

    # 3) f32 matmuls + sigmoid output (approx EUP reciprocal in the epilogue).
    mlp_sig = MLPPallas(input_dim, hidden_dim, output_dim, num_layers,
                        sigmoid_output=True, key=k_p)
    out_sig = mlp_sig(x)
    jax.block_until_ready(out_sig)
    ref_sig = _reference_forward(mlp_sig, x)
    assert out_sig.shape == (N, output_dim)
    assert jnp.allclose(out_sig, ref_sig, atol=5e-3, rtol=0)

    # 4) bf16 matmul operands (pre-cast weights), f32 accumulate + epilogue.
    mlp_bf16 = MLPPallas(input_dim, hidden_dim, output_dim, num_layers,
                         sigmoid_output=True, key=k_p,
                         compute_dtype=jnp.bfloat16)
    out_bf16 = mlp_bf16(x)
    jax.block_until_ready(out_bf16)
    assert out_bf16.shape == (N, output_dim)
    assert jnp.allclose(out_bf16, ref_sig, atol=2e-2, rtol=2e-2)

    print("KERNEL_OK")
</pallas_src>

<mosaic_0001>
module attributes {stable_mosaic.version = 11 : i64} {
  func.func @_fused_mlp_kernel(%arg0: i32, %arg1: memref<64x32xf32, #tpu.memory_space<vmem>>, %arg2: memref<32x32xf32, #tpu.memory_space<vmem>>, %arg3: memref<1x32xf32, #tpu.memory_space<vmem>>, %arg4: memref<32x32xf32, #tpu.memory_space<vmem>>, %arg5: memref<1x32xf32, #tpu.memory_space<vmem>>, %arg6: memref<32x16xf32, #tpu.memory_space<vmem>>, %arg7: memref<1x16xf32, #tpu.memory_space<vmem>>, %arg8: memref<64x16xf32, #tpu.memory_space<vmem>>) attributes {dimension_semantics = [#tpu.dimension_semantics<parallel>], iteration_bounds = array<i64: 1>, scalar_prefetch = 0 : i64, scratch_operands = 0 : i64, tpu.core_type = #tpu.core_type<tc>, window_params = [{transform_indices = @transform_0, window_bounds = array<i64: 64, 32>}, {pipeline_mode = #tpu.pipeline_mode<synchronous>, transform_indices = @transform_1, window_bounds = array<i64: 32, 32>}, {pipeline_mode = #tpu.pipeline_mode<synchronous>, transform_indices = @transform_2, window_bounds = array<i64: 1, 32>}, {pipeline_mode = #tpu.pipeline_mode<synchronous>, transform_indices = @transform_3, window_bounds = array<i64: 32, 32>}, {pipeline_mode = #tpu.pipeline_mode<synchronous>, transform_indices = @transform_4, window_bounds = array<i64: 1, 32>}, {pipeline_mode = #tpu.pipeline_mode<synchronous>, transform_indices = @transform_5, window_bounds = array<i64: 32, 16>}, {pipeline_mode = #tpu.pipeline_mode<synchronous>, transform_indices = @transform_6, window_bounds = array<i64: 1, 16>}, {transform_indices = @transform_7, window_bounds = array<i64: 64, 16>}]} {
    %c0 = arith.constant 0 : index
    %c0_0 = arith.constant 0 : index
    %0 = vector.load %arg1[%c0, %c0_0] : memref<64x32xf32, #tpu.memory_space<vmem>>, vector<64x32xf32>
    %c0_1 = arith.constant 0 : index
    %c0_2 = arith.constant 0 : index
    %1 = vector.load %arg2[%c0_1, %c0_2] : memref<32x32xf32, #tpu.memory_space<vmem>>, vector<32x32xf32>
    %c0_3 = arith.constant 0 : index
    %c0_4 = arith.constant 0 : index
    %2 = vector.load %arg3[%c0_3, %c0_4] : memref<1x32xf32, #tpu.memory_space<vmem>>, vector<1x32xf32>
    %cst = arith.constant dense<0.000000e+00> : vector<64x32xf32>
    %3 = tpu.matmul %0, %1, %cst {dimension_numbers = #tpu.dot_dimension_numbers<[1], [0], [0], [1], [0, 0, 1, 1], [], []>} : vector<64x32xf32>, vector<32x32xf32>, vector<64x32xf32> -> vector<64x32xf32>
    %4 = vector.broadcast %2 : vector<1x32xf32> to vector<64x32xf32>
    %5 = arith.addf %3, %4 : vector<64x32xf32>
    %cst_5 = arith.constant 0.000000e+00 : f32
    %6 = vector.broadcast %cst_5 : f32 to vector<64x32xf32>
    %7 = arith.maximumf %5, %6 : vector<64x32xf32>
    %c0_6 = arith.constant 0 : index
    %c0_7 = arith.constant 0 : index
    %8 = vector.load %arg4[%c0_6, %c0_7] : memref<32x32xf32, #tpu.memory_space<vmem>>, vector<32x32xf32>
    %c0_8 = arith.constant 0 : index
    %c0_9 = arith.constant 0 : index
    %9 = vector.load %arg5[%c0_8, %c0_9] : memref<1x32xf32, #tpu.memory_space<vmem>>, vector<1x32xf32>
    %cst_10 = arith.constant dense<0.000000e+00> : vector<64x32xf32>
    %10 = tpu.matmul %7, %8, %cst_10 {dimension_numbers = #tpu.dot_dimension_numbers<[1], [0], [0], [1], [0, 0, 1, 1], [], []>} : vector<64x32xf32>, vector<32x32xf32>, vector<64x32xf32> -> vector<64x32xf32>
    %11 = vector.broadcast %9 : vector<1x32xf32> to vector<64x32xf32>
    %12 = arith.addf %10, %11 : vector<64x32xf32>
    %cst_11 = arith.constant 0.000000e+00 : f32
    %13 = vector.broadcast %cst_11 : f32 to vector<64x32xf32>
    %14 = arith.maximumf %12, %13 : vector<64x32xf32>
    %c0_12 = arith.constant 0 : index
    %c0_13 = arith.constant 0 : index
    %15 = vector.load %arg6[%c0_12, %c0_13] : memref<32x16xf32, #tpu.memory_space<vmem>>, vector<32x16xf32>
    %c0_14 = arith.constant 0 : index
    %c0_15 = arith.constant 0 : index
    %16 = vector.load %arg7[%c0_14, %c0_15] : memref<1x16xf32, #tpu.memory_space<vmem>>, vector<1x16xf32>
    %cst_16 = arith.constant dense<0.000000e+00> : vector<64x16xf32>
    %17 = tpu.matmul %14, %15, %cst_16 {dimension_numbers = #tpu.dot_dimension_numbers<[1], [0], [0], [1], [0, 0, 1, 1], [], []>} : vector<64x32xf32>, vector<32x16xf32>, vector<64x16xf32> -> vector<64x16xf32>
    %18 = vector.broadcast %16 : vector<1x16xf32> to vector<64x16xf32>
    %19 = arith.addf %17, %18 : vector<64x16xf32>
    %c0_17 = arith.constant 0 : index
    %c0_18 = arith.constant 0 : index
    %20 = vector.load %arg8[%c0_17, %c0_18] : memref<64x16xf32, #tpu.memory_space<vmem>>, vector<64x16xf32>
    tpu.vector_store %arg8[%c0_17, %c0_18], %19 {strides = array<i32>} : memref<64x16xf32, #tpu.memory_space<vmem>>, vector<64x16xf32>,
    return
  }
  func.func @transform_0(%arg0: i32) -> (i32, i32) {
    %c0_i32 = arith.constant 0 : i32
    %c0_i32_0 = arith.constant 0 : i32
    return %arg0, %c0_i32 : i32, i32
  }
  func.func @transform_1(%arg0: i32) -> (i32, i32) {
    %c0_i32 = arith.constant 0 : i32
    %c0_i32_0 = arith.constant 0 : i32
    %c0_i32_1 = arith.constant 0 : i32
    return %c0_i32, %c0_i32_0 : i32, i32
  }
  func.func @transform_2(%arg0: i32) -> (i32, i32) {
    %c0_i32 = arith.constant 0 : i32
    %c0_i32_0 = arith.constant 0 : i32
    %c0_i32_1 = arith.constant 0 : i32
    return %c0_i32, %c0_i32_0 : i32, i32
  }
  func.func @transform_3(%arg0: i32) -> (i32, i32) {
    %c0_i32 = arith.constant 0 : i32
    %c0_i32_0 = arith.constant 0 : i32
    %c0_i32_1 = arith.constant 0 : i32
    return %c0_i32, %c0_i32_0 : i32, i32
  }
  func.func @transform_4(%arg0: i32) -> (i32, i32) {
    %c0_i32 = arith.constant 0 : i32
    %c0_i32_0 = arith.constant 0 : i32
    %c0_i32_1 = arith.constant 0 : i32
    return %c0_i32, %c0_i32_0 : i32, i32
  }
  func.func @transform_5(%arg0: i32) -> (i32, i32) {
    %c0_i32 = arith.constant 0 : i32
    %c0_i32_0 = arith.constant 0 : i32
    %c0_i32_1 = arith.constant 0 : i32
    return %c0_i32, %c0_i32_0 : i32, i32
  }
  func.func @transform_6(%arg0: i32) -> (i32, i32) {
    %c0_i32 = arith.constant 0 : i32
    %c0_i32_0 = arith.constant 0 : i32
    %c0_i32_1 = arith.constant 0 : i32
    return %c0_i32, %c0_i32_0 : i32, i32
  }
  func.func @transform_7(%arg0: i32) -> (i32, i32) {
    %c0_i32 = arith.constant 0 : i32
    %c0_i32_0 = arith.constant 0 : i32
    return %arg0, %c0_i32 : i32, i32
  }
}

</mosaic_0001>

<llo_original>
// kernel: tpu_custom_call.1
$region0: #{tpu_custom_call.1}
  #allocation0 [shape = 'u32[]', space=smem, size = 0x4, offset = 0x4, fixed_abs, tag = 'smem constant byte address 0x4 - core index']
  #allocation1 [shape = 'u32[144,128]{1,0:T(1,128)}', space=vmem, size = 0x12000, scoped, tag = 'internal scratch']
  %s0 = inlined_call_operand.vmem [shape: f32[64,32], index: 0, kind: input, shape index: {}]
  %s1 = inlined_call_operand.vmem [shape: f32[32,32], index: 1, kind: input, shape index: {}]
  %s2 = inlined_call_operand.vmem [shape: f32[1,32], index: 2, kind: input, shape index: {}]
  %s3 = inlined_call_operand.vmem [shape: f32[32,32], index: 3, kind: input, shape index: {}]
  %s4 = inlined_call_operand.vmem [shape: f32[1,32], index: 4, kind: input, shape index: {}]
  %s5 = inlined_call_operand.vmem [shape: f32[32,16], index: 5, kind: input, shape index: {}]
  %s6 = inlined_call_operand.vmem [shape: f32[1,16], index: 6, kind: input, shape index: {}]
  %s7 = inlined_call_operand.vmem [shape: f32[64,16], index: 7, kind: output, shape index: {}]
  %s8 = sld [smem:[#allocation0]]
  $region38: #{tpu_custom_call.1} parent=0
    _
  %s10 = ssub.s32 1, %s8
  %s11 = scalar_select 0, %s10, %s8
  // Predicated region
  $region2: #{tpu_custom_call.1} parent=0 // pred_check
    _
  $region3: #{tpu_custom_call.1} parent=0 // pred_check_branch
    %13 = sbr.rel (0) target = $region5
  $region4: #{tpu_custom_call.1} parent=0 // pred_region
    _
  $region5: #{tpu_custom_call.1} parent=0 // pred_fallthru
    _
  // Predicated region
  $region6: #{tpu_custom_call.1} parent=0 // pred_check
    _
  $region7: #{tpu_custom_call.1} parent=0 // pred_check_branch
    %15 = sbr.rel (0) target = $region9
  $region8: #{tpu_custom_call.1} parent=0 // pred_region
    _
  $region9: #{tpu_custom_call.1} parent=0 // pred_fallthru
    _
  // Predicated region
  $region10: #{tpu_custom_call.1} parent=0 // pred_check
    _
  $region11: #{tpu_custom_call.1} parent=0 // pred_check_branch
    %17 = sbr.rel (0) target = $region13
  $region12: #{tpu_custom_call.1} parent=0 // pred_region
    _
  $region13: #{tpu_custom_call.1} parent=0 // pred_fallthru
    _
  // Predicated region
  $region14: #{tpu_custom_call.1} parent=0 // pred_check
    _
  $region15: #{tpu_custom_call.1} parent=0 // pred_check_branch
    %19 = sbr.rel (0) target = $region17
  $region16: #{tpu_custom_call.1} parent=0 // pred_region
    _
  $region17: #{tpu_custom_call.1} parent=0 // pred_fallthru
    _
  // Predicated region
  $region18: #{tpu_custom_call.1} parent=0 // pred_check
    _
  $region19: #{tpu_custom_call.1} parent=0 // pred_check_branch
    %21 = sbr.rel (0) target = $region21
  $region20: #{tpu_custom_call.1} parent=0 // pred_region
    _
  $region21: #{tpu_custom_call.1} parent=0 // pred_fallthru
    _
  // Predicated region
  $region22: #{tpu_custom_call.1} parent=0 // pred_check
    _
  $region23: #{tpu_custom_call.1} parent=0 // pred_check_branch
    %23 = sbr.rel (0) target = $region25
  $region24: #{tpu_custom_call.1} parent=0 // pred_region
    _
  $region25: #{tpu_custom_call.1} parent=0 // pred_fallthru
    _
  // Predicated region
  $region26: #{tpu_custom_call.1} parent=0 // pred_check
    _
  $region27: #{tpu_custom_call.1} parent=0 // pred_check_branch
    %25 = sbr.rel (0) target = $region29
  $region28: #{tpu_custom_call.1} parent=0 // pred_region
    _
  $region29: #{tpu_custom_call.1} parent=0 // pred_fallthru
    _
  %v26 = vld [vmem:[%s0] sm:$0xff]
  %v27 = vld [vmem:[%s0 + $0x8] sm:$0xff]
  %v28 = vld [vmem:[%s0 + $0x10] sm:$0xff]
  %v29 = vld [vmem:[%s0 + $0x18] sm:$0xff]
  %v30 = vld [vmem:[%s0 + $0x20] sm:$0xff]
  %v31 = vld [vmem:[%s0 + $0x28] sm:$0xff]
  %v32 = vld [vmem:[%s0 + $0x30] sm:$0xff]
  %v33 = vld [vmem:[%s0 + $0x38] sm:$0xff]
  %v34 = vld [vmem:[%s1] sm:$0xff]
  %v35 = vld [vmem:[%s1 + $0x8] sm:$0xff]
  %v36 = vld [vmem:[%s1 + $0x10] sm:$0xff]
  %v37 = vld [vmem:[%s1 + $0x18] sm:$0xff]
  %v38 = vld [vmem:[%s2] sm:$0x1]
  %v40 = vlaneseq
  %v41 = vshrl.u32 %v40, 7
  %v42 = vsub.s32 0, %v41
  %v43 = vrot.slane %v38, %v42
  %vm45 = vcmask 261120
  %v47 = vsel %vm45, %v26, 0
  %v50 = vsel %vm45, %v27, 0
  %v53 = vsel %vm45, %v28, 0
  %v56 = vsel %vm45, %v29, 0
  %v59 = vsel %vm45, %v30, 0
  %v62 = vsel %vm45, %v31, 0
  %v65 = vsel %vm45, %v32, 0
  %v68 = vsel %vm45, %v33, 0
  %70 = vmatprep.subr.mxu0 0.0
  %71 = vmatpush1.msra.mxu0 %v34
  %72 = vmatprep.subr.mxu0 0.0
  %73 = vmatpush1.msra.mxu0 %v35
  %74 = vmatprep.subr.mxu0 0.0
  %75 = vmatpush1.msra.mxu0 %v36
  %76 = vmatprep.subr.mxu0 0.0
  %77 = vmatpush1.msra.mxu0 %v37
  %78 = vmatprep.subr.mxu0 0.0
  %79 = vmatpush1.msra.mxu0 0.0
  %80 = vmatprep.subr.mxu0 0.0
  %81 = vmatpush1.msra.mxu0 0.0
  %82 = vmatprep.subr.mxu0 0.0
  %83 = vmatpush1.msra.mxu0 0.0
  %84 = vmatprep.subr.mxu0 0.0
  %85 = vmatpush1.msra.mxu0 0.0
  %86 = vmatprep.subr.mxu0 0.0
  %87 = vmatpush1.msra.mxu0 0.0
  %88 = vmatprep.subr.mxu0 0.0
  %89 = vmatpush1.msra.mxu0 0.0
  %90 = vmatprep.subr.mxu0 0.0
  %91 = vmatpush1.msra.mxu0 0.0
  %92 = vmatprep.subr.mxu0 0.0
  %93 = vmatpush1.msra.mxu0 0.0
  %94 = vmatprep.subr.mxu0 0.0
  %95 = vmatpush1.msra.mxu0 0.0
  %96 = vmatprep.subr.mxu0 0.0
  %97 = vmatpush1.msra.mxu0 0.0
  %98 = vmatprep.subr.mxu0 0.0
  %99 = vmatpush1.msra.mxu0 0.0
  %100 = vmatprep.subr.mxu0 0.0
  %101 = vmatpush1.msra.mxu0 0.0
  %102 = vmatprep.subr.mxu0 0.0
  %103 = vmatpush1.msra.mxu0 0.0
  %104 = vmatprep.subr.mxu0 0.0
  %105 = vmatpush1.msra.mxu0 0.0
  %106 = vmatprep.subr.mxu0 0.0
  %107 = vmatpush1.msra.mxu0 0.0
  %108 = vmatprep.subr.mxu0 0.0
  %109 = vmatpush1.msra.mxu0 0.0
  %110 = vmatprep.subr.mxu0 0.0
  %111 = vmatpush1.msra.mxu0 0.0
  %112 = vmatprep.subr.mxu0 0.0
  %113 = vmatpush1.msra.mxu0 0.0
  %114 = vmatprep.subr.mxu0 0.0
  %115 = vmatpush1.msra.mxu0 0.0
  %116 = vmatprep.subr.mxu0 0.0
  %117 = vmatpush1.msra.mxu0 0.0
  %118 = vmatprep.subr.mxu0 0.0
  %119 = vmatpush1.msra.mxu0 0.0
  %120 = vmatprep.subr.mxu0 0.0
  %121 = vmatpush1.msra.mxu0 0.0
  %122 = vmatprep.subr.mxu0 0.0
  %123 = vmatpush1.msra.mxu0 0.0
  %124 = vmatprep.subr.mxu0 0.0
  %125 = vmatpush1.msra.mxu0 0.0
  %126 = vmatprep.subr.mxu0 0.0
  %127 = vmatpush1.msra.mxu0 0.0
  %128 = vmatprep.subr.mxu0 0.0
  %129 = vmatpush1.msra.mxu0 0.0
  %130 = vmatprep.subr.mxu0 0.0
  %131 = vmatpush1.msra.mxu0 0.0
  %132 = vmatprep.subr.mxu0 0.0
  %133 = vmatpush1.msra.mxu0 0.0
  %134 = vmatprep.mubr.f32.mxu0 0.0
  %135 = vmatmul.mubr.f32.gmra.mrb[0].mxu0 %v47
  %v136 = vpop.f32.mrb[0].mxu0
  %v137 = vadd.f32 %v43, %v136
  %v138 = vpop.f32.mrb[0].mxu0
  %139 = vmatprep.mubr.f32.mxu0 0.0
  %140 = vmatmul.mubr.f32.gmra.mrb[0].mxu0 %v50
  %v141 = vpop.f32.mrb[0].mxu0
  %v142 = vadd.f32 %v43, %v141
  %v143 = vpop.f32.mrb[0].mxu0
  %144 = vmatprep.mubr.f32.mxu0 0.0
  %145 = vmatmul.mubr.f32.gmra.mrb[0].mxu0 %v53
  %v146 = vpop.f32.mrb[0].mxu0
  %v147 = vadd.f32 %v43, %v146
  %v148 = vpop.f32.mrb[0].mxu0
  %149 = vmatprep.mubr.f32.mxu0 0.0
  %150 = vmatmul.mubr.f32.gmra.mrb[0].mxu0 %v56
  %v151 = vpop.f32.mrb[0].mxu0
  %v152 = vadd.f32 %v43, %v151
  %v153 = vpop.f32.mrb[0].mxu0
  %154 = vmatprep.mubr.f32.mxu0 0.0
  %155 = vmatmul.mubr.f32.gmra.mrb[0].mxu0 %v59
  %v156 = vpop.f32.mrb[0].mxu0
  %v157 = vadd.f32 %v43, %v156
  %v158 = vpop.f32.mrb[0].mxu0
  %159 = vmatprep.mubr.f32.mxu0 0.0
  %160 = vmatmul.mubr.f32.gmra.mrb[0].mxu0 %v62
  %v161 = vpop.f32.mrb[0].mxu0
  %v162 = vadd.f32 %v43, %v161
  %v163 = vpop.f32.mrb[0].mxu0
  %164 = vmatprep.mubr.f32.mxu0 0.0
  %165 = vmatmul.mubr.f32.gmra.mrb[0].mxu0 %v65
  %v166 = vpop.f32.mrb[0].mxu0
  %v167 = vadd.f32 %v43, %v166
  %v168 = vpop.f32.mrb[0].mxu0
  %169 = vmatprep.mubr.f32.mxu0 0.0
  %170 = vmatmul.mubr.f32.gmra.mrb[0].mxu0 %v68
  %v171 = vpop.f32.mrb[0].mxu0
  %v172 = vadd.f32 %v43, %v171
  %v173 = vpop.f32.mrb[0].mxu0
  %174 = vdwg.mxu0
  %v175 = vmax.f32 %v137, 0.0
  %v176 = vmax.f32 %v142, 0.0
  %v177 = vmax.f32 %v147, 0.0
  %v178 = vmax.f32 %v152, 0.0
  %v179 = vmax.f32 %v157, 0.0
  %v180 = vmax.f32 %v162, 0.0
  %v181 = vmax.f32 %v167, 0.0
  %v182 = vmax.f32 %v172, 0.0
  %v183 = vld [vmem:[%s3] sm:$0xff]
  %v184 = vld [vmem:[%s3 + $0x8] sm:$0xff]
  %v185 = vld [vmem:[%s3 + $0x10] sm:$0xff]
  %v186 = vld [vmem:[%s3 + $0x18] sm:$0xff]
  %v187 = vld [vmem:[%s4] sm:$0x1]
  %v189 = vlaneseq
  %v190 = vshrl.u32 %v189, 7
  %v191 = vsub.s32 0, %v190
  %v192 = vrot.slane %v187, %v191
  %v195 = vsel %vm45, %v175, 0
  %v198 = vsel %vm45, %v176, 0
  %v201 = vsel %vm45, %v177, 0
  %v204 = vsel %vm45, %v178, 0
  %v207 = vsel %vm45, %v179, 0
  %v210 = vsel %vm45, %v180, 0
  %v213 = vsel %vm45, %v181, 0
  %v216 = vsel %vm45, %v182, 0
  %218 = vmatprep.subr.mxu0 0.0
  %219 = vmatpush1.msra.mxu0 %v183
  %220 = vmatprep.subr.mxu0 0.0
  %221 = vmatpush1.msra.mxu0 %v184
  %222 = vmatprep.subr.mxu0 0.0
  %223 = vmatpush1.msra.mxu0 %v185
  %224 = vmatprep.subr.mxu0 0.0
  %225 = vmatpush1.msra.mxu0 %v186
  %226 = vmatprep.subr.mxu0 0.0
  %227 = vmatpush1.msra.mxu0 0.0
  %228 = vmatprep.subr.mxu0 0.0
  %229 = vmatpush1.msra.mxu0 0.0
  %230 = vmatprep.subr.mxu0 0.0
  %231 = vmatpush1.msra.mxu0 0.0
  %232 = vmatprep.subr.mxu0 0.0
  %233 = vmatpush1.msra.mxu0 0.0
  %234 = vmatprep.subr.mxu0 0.0
  %235 = vmatpush1.msra.mxu0 0.0
  %236 = vmatprep.subr.mxu0 0.0
  %237 = vmatpush1.msra.mxu0 0.0
  %238 = vmatprep.subr.mxu0 0.0
  %239 = vmatpush1.msra.mxu0 0.0
  %240 = vmatprep.subr.mxu0 0.0
  %241 = vmatpush1.msra.mxu0 0.0
  %242 = vmatprep.subr.mxu0 0.0
  %243 = vmatpush1.msra.mxu0 0.0
  %244 = vmatprep.subr.mxu0 0.0
  %245 = vmatpush1.msra.mxu0 0.0
  %246 = vmatprep.subr.mxu0 0.0
  %247 = vmatpush1.msra.mxu0 0.0
  %248 = vmatprep.subr.mxu0 0.0
  %249 = vmatpush1.msra.mxu0 0.0
  %250 = vmatprep.subr.mxu0 0.0
  %251 = vmatpush1.msra.mxu0 0.0
  %252 = vmatprep.subr.mxu0 0.0
  %253 = vmatpush1.msra.mxu0 0.0
  %254 = vmatprep.subr.mxu0 0.0
  %255 = vmatpush1.msra.mxu0 0.0
  %256 = vmatprep.subr.mxu0 0.0
  %257 = vmatpush1.msra.mxu0 0.0
  %258 = vmatprep.subr.mxu0 0.0
  %259 = vmatpush1.msra.mxu0 0.0
  %260 = vmatprep.subr.mxu0 0.0
  %261 = vmatpush1.msra.mxu0 0.0
  %262 = vmatprep.subr.mxu0 0.0
  %263 = vmatpush1.msra.mxu0 0.0
  %264 = vmatprep.subr.mxu0 0.0
  %265 = vmatpush1.msra.mxu0 0.0
  %266 = vmatprep.subr.mxu0 0.0
  %267 = vmatpush1.msra.mxu0 0.0
  %268 = vmatprep.subr.mxu0 0.0
  %269 = vmatpush1.msra.mxu0 0.0
  %270 = vmatprep.subr.mxu0 0.0
  %271 = vmatpush1.msra.mxu0 0.0
  %272 = vmatprep.subr.mxu0 0.0
  %273 = vmatpush1.msra.mxu0 0.0
  %274 = vmatprep.subr.mxu0 0.0
  %275 = vmatpush1.msra.mxu0 0.0
  %276 = vmatprep.subr.mxu0 0.0
  %277 = vmatpush1.msra.mxu0 0.0
  %278 = vmatprep.subr.mxu0 0.0
  %279 = vmatpush1.msra.mxu0 0.0
  %280 = vmatprep.subr.mxu0 0.0
  %281 = vmatpush1.msra.mxu0 0.0
  %282 = vmatprep.mubr.f32.mxu0 0.0
  %283 = vmatmul.mubr.f32.gmra.mrb[0].mxu0 %v195
  %v284 = vpop.f32.mrb[0].mxu0
  %v285 = vadd.f32 %v192, %v284
  %v286 = vpop.f32.mrb[0].mxu0
  %287 = vmatprep.mubr.f32.mxu0 0.0
  %288 = vmatmul.mubr.f32.gmra.mrb[0].mxu0 %v198
  %v289 = vpop.f32.mrb[0].mxu0
  %v290 = vadd.f32 %v192, %v289
  %v291 = vpop.f32.mrb[0].mxu0
  %292 = vmatprep.mubr.f32.mxu0 0.0
  %293 = vmatmul.mubr.f32.gmra.mrb[0].mxu0 %v201
  %v294 = vpop.f32.mrb[0].mxu0
  %v295 = vadd.f32 %v192, %v294
  %v296 = vpop.f32.mrb[0].mxu0
  %297 = vmatprep.mubr.f32.mxu0 0.0
  %298 = vmatmul.mubr.f32.gmra.mrb[0].mxu0 %v204
  %v299 = vpop.f32.mrb[0].mxu0
  %v300 = vadd.f32 %v192, %v299
  %v301 = vpop.f32.mrb[0].mxu0
  %302 = vmatprep.mubr.f32.mxu0 0.0
  %303 = vmatmul.mubr.f32.gmra.mrb[0].mxu0 %v207
  %v304 = vpop.f32.mrb[0].mxu0
  %v305 = vadd.f32 %v192, %v304
  %v306 = vpop.f32.mrb[0].mxu0
  %307 = vmatprep.mubr.f32.mxu0 0.0
  %308 = vmatmul.mubr.f32.gmra.mrb[0].mxu0 %v210
  %v309 = vpop.f32.mrb[0].mxu0
  %v310 = vadd.f32 %v192, %v309
  %v311 = vpop.f32.mrb[0].mxu0
  %312 = vmatprep.mubr.f32.mxu0 0.0
  %313 = vmatmul.mubr.f32.gmra.mrb[0].mxu0 %v213
  %v314 = vpop.f32.mrb[0].mxu0
  %v315 = vadd.f32 %v192, %v314
  %v316 = vpop.f32.mrb[0].mxu0
  %317 = vmatprep.mubr.f32.mxu0 0.0
  %318 = vmatmul.mubr.f32.gmra.mrb[0].mxu0 %v216
  %v319 = vpop.f32.mrb[0].mxu0
  %v320 = vadd.f32 %v192, %v319
  %v321 = vpop.f32.mrb[0].mxu0
  %322 = vdwg.mxu0
  %v323 = vmax.f32 %v285, 0.0
  %v324 = vmax.f32 %v290, 0.0
  %v325 = vmax.f32 %v295, 0.0
  %v326 = vmax.f32 %v300, 0.0
  %v327 = vmax.f32 %v305, 0.0
  %v328 = vmax.f32 %v310, 0.0
  %v329 = vmax.f32 %v315, 0.0
  %v330 = vmax.f32 %v320, 0.0
  %v331 = vld [vmem:[%s5] sm:$0xff]
  %v332 = vld [vmem:[%s5 + $0x8] sm:$0xff]
  %v333 = vld [vmem:[%s5 + $0x10] sm:$0xff]
  %v334 = vld [vmem:[%s5 + $0x18] sm:$0xff]
  %v335 = vld [vmem:[%s6] sm:$0x1]
  %v337 = vlaneseq
  %v338 = vshrl.u32 %v337, 7
  %v339 = vsub.s32 0, %v338
  %v340 = vrot.slane %v335, %v339
  %v343 = vsel %vm45, %v323, 0
  %v346 = vsel %vm45, %v324, 0
  %v349 = vsel %vm45, %v325, 0
  %v352 = vsel %vm45, %v326, 0
  %v355 = vsel %vm45, %v327, 0
  %v358 = vsel %vm45, %v328, 0
  %v361 = vsel %vm45, %v329, 0
  %v364 = vsel %vm45, %v330, 0
  %366 = vmatprep.subr.mxu0 0.0
  %367 = vmatpush1.msra.mxu0 %v331
  %368 = vmatprep.subr.mxu0 0.0
  %369 = vmatpush1.msra.mxu0 %v332
  %370 = vmatprep.subr.mxu0 0.0
  %371 = vmatpush1.msra.mxu0 %v333
  %372 = vmatprep.subr.mxu0 0.0
  %373 = vmatpush1.msra.mxu0 %v334
  %374 = vmatprep.subr.mxu0 0.0
  %375 = vmatpush1.msra.mxu0 0.0
  %376 = vmatprep.subr.mxu0 0.0
  %377 = vmatpush1.msra.mxu0 0.0
  %378 = vmatprep.subr.mxu0 0.0
  %379 = vmatpush1.msra.mxu0 0.0
  %380 = vmatprep.subr.mxu0 0.0
  %381 = vmatpush1.msra.mxu0 0.0
  %382 = vmatprep.subr.mxu0 0.0
  %383 = vmatpush1.msra.mxu0 0.0
  %384 = vmatprep.subr.mxu0 0.0
  %385 = vmatpush1.msra.mxu0 0.0
  %386 = vmatprep.subr.mxu0 0.0
  %387 = vmatpush1.msra.mxu0 0.0
  %388 = vmatprep.subr.mxu0 0.0
  %389 = vmatpush1.msra.mxu0 0.0
  %390 = vmatprep.subr.mxu0 0.0
  %391 = vmatpush1.msra.mxu0 0.0
  %392 = vmatprep.subr.mxu0 0.0
  %393 = vmatpush1.msra.mxu0 0.0
  %394 = vmatprep.subr.mxu0 0.0
  %395 = vmatpush1.msra.mxu0 0.0
  %396 = vmatprep.subr.mxu0 0.0
  %397 = vmatpush1.msra.mxu0 0.0
  %398 = vmatprep.subr.mxu0 0.0
  %399 = vmatpush1.msra.mxu0 0.0
  %400 = vmatprep.subr.mxu0 0.0
  %401 = vmatpush1.msra.mxu0 0.0
  %402 = vmatprep.subr.mxu0 0.0
  %403 = vmatpush1.msra.mxu0 0.0
  %404 = vmatprep.subr.mxu0 0.0
  %405 = vmatpush1.msra.mxu0 0.0
  %406 = vmatprep.subr.mxu0 0.0
  %407 = vmatpush1.msra.mxu0 0.0
  %408 = vmatprep.subr.mxu0 0.0
  %409 = vmatpush1.msra.mxu0 0.0
  %410 = vmatprep.subr.mxu0 0.0
  %411 = vmatpush1.msra.mxu0 0.0
  %412 = vmatprep.subr.mxu0 0.0
  %413 = vmatpush1.msra.mxu0 0.0
  %414 = vmatprep.subr.mxu0 0.0
  %415 = vmatpush1.msra.mxu0 0.0
  %416 = vmatprep.subr.mxu0 0.0
  %417 = vmatpush1.msra.mxu0 0.0
  %418 = vmatprep.subr.mxu0 0.0
  %419 = vmatpush1.msra.mxu0 0.0
  %420 = vmatprep.subr.mxu0 0.0
  %421 = vmatpush1.msra.mxu0 0.0
  %422 = vmatprep.subr.mxu0 0.0
  %423 = vmatpush1.msra.mxu0 0.0
  %424 = vmatprep.subr.mxu0 0.0
  %425 = vmatpush1.msra.mxu0 0.0
  %426 = vmatprep.subr.mxu0 0.0
  %427 = vmatpush1.msra.mxu0 0.0
  %428 = vmatprep.subr.mxu0 0.0
  %429 = vmatpush1.msra.mxu0 0.0
  %430 = vmatprep.mubr.f32.mxu0 0.0
  %431 = vmatmul.mubr.f32.gmra.mrb[0].mxu0 %v343
  %v432 = vpop.f32.mrb[0].mxu0
  %v433 = vadd.f32 %v340, %v432
  %v434 = vpop.f32.mrb[0].mxu0
  %435 = vmatprep.mubr.f32.mxu0 0.0
  %436 = vmatmul.mubr.f32.gmra.mrb[0].mxu0 %v346
  %v437 = vpop.f32.mrb[0].mxu0
  %v438 = vadd.f32 %v340, %v437
  %v439 = vpop.f32.mrb[0].mxu0
  %440 = vmatprep.mubr.f32.mxu0 0.0
  %441 = vmatmul.mubr.f32.gmra.mrb[0].mxu0 %v349
  %v442 = vpop.f32.mrb[0].mxu0
  %v443 = vadd.f32 %v340, %v442
  %v444 = vpop.f32.mrb[0].mxu0
  %445 = vmatprep.mubr.f32.mxu0 0.0
  %446 = vmatmul.mubr.f32.gmra.mrb[0].mxu0 %v352
  %v447 = vpop.f32.mrb[0].mxu0
  %v448 = vadd.f32 %v340, %v447
  %v449 = vpop.f32.mrb[0].mxu0
  %450 = vmatprep.mubr.f32.mxu0 0.0
  %451 = vmatmul.mubr.f32.gmra.mrb[0].mxu0 %v355
  %v452 = vpop.f32.mrb[0].mxu0
  %v453 = vadd.f32 %v340, %v452
  %v454 = vpop.f32.mrb[0].mxu0
  %455 = vmatprep.mubr.f32.mxu0 0.0
  %456 = vmatmul.mubr.f32.gmra.mrb[0].mxu0 %v358
  %v457 = vpop.f32.mrb[0].mxu0
  %v458 = vadd.f32 %v340, %v457
  %v459 = vpop.f32.mrb[0].mxu0
  %460 = vmatprep.mubr.f32.mxu0 0.0
  %461 = vmatmul.mubr.f32.gmra.mrb[0].mxu0 %v361
  %v462 = vpop.f32.mrb[0].mxu0
  %v463 = vadd.f32 %v340, %v462
  %v464 = vpop.f32.mrb[0].mxu0
  %465 = vmatprep.mubr.f32.mxu0 0.0
  %466 = vmatmul.mubr.f32.gmra.mrb[0].mxu0 %v364
  %v467 = vpop.f32.mrb[0].mxu0
  %v468 = vadd.f32 %v340, %v467
  %v469 = vpop.f32.mrb[0].mxu0
  %470 = vdwg.mxu0
  %vm471 = vcmask 130048
  %472 = vst.msk [vmem:[%s7] sm:$0xff] %vm471, %v433
  %473 = vst.msk [vmem:[%s7 + $0x8] sm:$0xff] %vm471, %v438
  %474 = vst.msk [vmem:[%s7 + $0x10] sm:$0xff] %vm471, %v443
  %475 = vst.msk [vmem:[%s7 + $0x18] sm:$0xff] %vm471, %v448
  %476 = vst.msk [vmem:[%s7 + $0x20] sm:$0xff] %vm471, %v453
  %477 = vst.msk [vmem:[%s7 + $0x28] sm:$0xff] %vm471, %v458
  %478 = vst.msk [vmem:[%s7 + $0x30] sm:$0xff] %vm471, %v463
  %479 = vst.msk [vmem:[%s7 + $0x38] sm:$0xff] %vm471, %v468
  // Predicated region
  $region30: #{tpu_custom_call.1} parent=0 // pred_check
    _
  $region31: #{tpu_custom_call.1} parent=0 // pred_check_branch
    %481 = sbr.rel (0) target = $region33
  $region32: #{tpu_custom_call.1} parent=0 // pred_region
    _
  $region33: #{tpu_custom_call.1} parent=0 // pred_fallthru
    _
  // Predicated region
  $region34: #{tpu_custom_call.1} parent=0 // pred_check
    _
  $region35: #{tpu_custom_call.1} parent=0 // pred_check_branch
    %483 = sbr.rel (0) target = $region37
  $region36: #{tpu_custom_call.1} parent=0 // pred_region
    _
  $region37: #{tpu_custom_call.1} parent=0 // pred_fallthru
    _

</llo_original>
